<compile_context>
chip_gen: v7x
topology: tpu7x:2x2x1
jax: 0.10.0
libtpu: 0.0.40
codegen_flags: <defaults>
</compile_context>

<pallas_src>
import jax
import jax.numpy as jnp
from jax.experimental import pallas as pl
from jax.experimental.pallas import tpu as pltpu


# ----------------------------- helpers ---------------------------------------

def _physical_vmem_bytes():
    """Physical VMEM per TensorCore (generation-aware), with a safe fallback."""
    try:
        return int(pltpu.get_tpu_info().vmem_capacity_bytes)
    except Exception:
        return 64 << 20  # most restrictive current part (v7x)


def _ceil_to(a, m):
    return -(-a // m) * m


# ----------------------------- kernels ----------------------------------------

def _make_fused_kernel(hw):
    """Fully fused: stats + MLP + rescale on a VMEM-resident per-batch slab."""
    inv_hw = 1.0 / float(hw)

    def kernel(x_ref, w1t_ref, b1_ref, w2_ref, b2_ref, o_ref):
        # x_ref/o_ref: (1, C, HW); w1t: (C, Cr); b1: (1, Cr); w2: (C, Cr); b2: (C, 1)
        x = x_ref[...].astype(jnp.float32)                         # (1, C, HW)

        # Two-pass mean/variance on the resident slab (matches the reference
        # numerics; avoids E[x^2] - E[x]^2 cancellation) — no extra HBM reads.
        mean = jnp.sum(x, axis=-1, keepdims=True) * inv_hw         # (1, C, 1)
        d = x - mean
        var = jnp.sum(d * d, axis=-1, keepdims=True) * inv_hw      # (1, C, 1)
        y = jnp.sqrt(var) + mean                                   # contrast + avg pool

        # Tiny C -> Cr -> C MLP + sigmoid.  Channel axis stays in sublanes the
        # whole way, so there are no in-kernel transposes; Cr is tiny, so the
        # VPU/XLU handles it (MXU stays idle).
        yc = y[0]                                                  # (C, 1)
        z1 = jnp.sum(w1t_ref[...] * yc, axis=0, keepdims=True) + b1_ref[...]   # (1, Cr)
        z1 = jnp.maximum(z1, 0.0)
        logits = jnp.sum(w2_ref[...] * z1, axis=-1, keepdims=True) + b2_ref[...]  # (C, 1)
        scale = jax.nn.sigmoid(logits)                             # (C, 1), f32

        # Rescale from the resident copy; multiply in f32, store input dtype.
        o_ref[...] = (x * scale[None]).astype(o_ref.dtype)

    return kernel


def _make_stats_scale_kernel(hw, n_hw):
    """Tiled pass 1: streamed sum / sum^2 + in-kernel MLP epilogue -> scale."""
    inv_hw = 1.0 / float(hw)

    def kernel(x_ref, w1t_ref, b1_ref, w2_ref, b2_ref, scale_ref, s1_ref, s2_ref):
        h = pl.program_id(1)

        @pl.when(h == 0)
        def _():
            s1_ref[...] = jnp.zeros_like(s1_ref)
            s2_ref[...] = jnp.zeros_like(s2_ref)

        x = x_ref[...].astype(jnp.float32)                         # (1, C, THW)
        s1_ref[...] += jnp.sum(x, axis=-1, keepdims=True)
        s2_ref[...] += jnp.sum(x * x, axis=-1, keepdims=True)

        @pl.when(h == n_hw - 1)
        def _():
            mean = s1_ref[...] * inv_hw                            # (1, C, 1)
            # Single-pass variance (clamped); only used on the streamed path
            # where the slab is too large to hold for a two-pass computation.
            var = jnp.maximum(s2_ref[...] * inv_hw - mean * mean, 0.0)
            y = jnp.sqrt(var) + mean                               # (1, C, 1)
            yc = y[0]                                              # (C, 1)
            z1 = jnp.sum(w1t_ref[...] * yc, axis=0, keepdims=True) + b1_ref[...]
            z1 = jnp.maximum(z1, 0.0)
            logits = jnp.sum(w2_ref[...] * z1, axis=-1, keepdims=True) + b2_ref[...]
            scale_ref[...] = jax.nn.sigmoid(logits)[None]          # (1, C, 1), f32

    return kernel


def _rescale_kernel(x_ref, scale_ref, o_ref):
    """Tiled pass 2: o = x * scale (multiply in f32, lane-dense store)."""
    o_ref[...] = (x_ref[...].astype(jnp.float32) * scale_ref[...]).astype(o_ref.dtype)


# ----------------------------- wrapper -----------------------------------------

def cca_layer(x, w1, b1, w2, b2):
    """x: (B, C, H, W) NCHW; w1: (Cr, C); b1: (Cr,); w2: (C, Cr); b2: (C,)."""
    B, C, H, W = x.shape
    HW = H * W
    Cr = w1.shape[0]
    itemsize = jnp.dtype(x.dtype).itemsize

    x_flat = x.reshape(B, C, HW)

    # Rearrange the 1x1-conv weights so the in-kernel MLP keeps the channel
    # axis in sublanes with no transposes of computed values (kept in f32).
    w1t = jnp.asarray(w1, jnp.float32).T.reshape(C, Cr)     # (C, Cr)
    b1r = jnp.asarray(b1, jnp.float32).reshape(1, Cr)       # (1, Cr)
    w2r = jnp.asarray(w2, jnp.float32).reshape(C, Cr)       # (C, Cr)
    b2r = jnp.asarray(b2, jnp.float32).reshape(C, 1)        # (C, 1)

    phys_vmem = _physical_vmem_bytes()
    vmem_limit = (phys_vmem * 3) // 4          # 48 MiB on 64-MiB parts, 96 MiB on 128-MiB
    slab_bytes = C * HW * itemsize
    slab_budget = phys_vmem // 10              # headroom for 2x in + 2x out buffers + f32 temps

    # Tiny-weight BlockSpecs (full arrays, shared by both paths).
    w_specs = [
        pl.BlockSpec((C, Cr), lambda b, *_: (0, 0)),
        pl.BlockSpec((1, Cr), lambda b, *_: (0, 0)),
        pl.BlockSpec((C, Cr), lambda b, *_: (0, 0)),
        pl.BlockSpec((C, 1), lambda b, *_: (0, 0)),
    ]

    if slab_bytes <= slab_budget:
        # ---- fully fused: one HBM read + one HBM write of x -------------------
        out = pl.pallas_call(
            _make_fused_kernel(HW),
            out_shape=jax.ShapeDtypeStruct((B, C, HW), x.dtype),
            grid_spec=pltpu.PrefetchScalarGridSpec(
                num_scalar_prefetch=0,
                grid=(B,),
                in_specs=[pl.BlockSpec((1, C, HW), lambda b: (b, 0, 0))] + w_specs,
                out_specs=pl.BlockSpec((1, C, HW), lambda b: (b, 0, 0))),
            compiler_params=pltpu.CompilerParams(
                # NOTE: on v7x megacore a size-1 / odd batch leaves one core idle
                # here; this layer is normally called with B >= 2 per shard.
                dimension_semantics=("parallel",),
                vmem_limit_bytes=vmem_limit),
        )(x_flat, w1t, b1r, w2r, b2r)
        return out.reshape(B, C, H, W)

    # ---- tiled fallback: per-batch slab does not fit VMEM ----------------------
    # Generation-aware spatial tile (multiple of 128 lanes): ~4 MiB on 64-MiB
    # VMEM parts (v7x), ~8 MiB on 128-MiB parts (v5e/v6e).
    target_tile_bytes = (4 << 20) if phys_vmem <= (64 << 20) else (8 << 20)
    row_bytes = C * itemsize
    thw = max(128, (target_tile_bytes // row_bytes) // 128 * 128)
    thw = min(thw, _ceil_to(HW, 128))
    hw_pad = _ceil_to(HW, thw)
    n_hw = hw_pad // thw

    if hw_pad != HW:
        # Zero padding is an exact no-op for sum and sum^2; the divisor stays HW.
        x_flat = jnp.pad(x_flat, ((0, 0), (0, 0), (0, hw_pad - HW)))

    # Pass 1: streamed stats + MLP epilogue -> per-(b, c) scale in f32.
    scale = pl.pallas_call(
        _make_stats_scale_kernel(HW, n_hw),
        out_shape=jax.ShapeDtypeStruct((B, C, 1), jnp.float32),
        grid_spec=pltpu.PrefetchScalarGridSpec(
            num_scalar_prefetch=0,
            grid=(B, n_hw),
            in_specs=[pl.BlockSpec((1, C, thw), lambda b, h: (b, 0, h))] + w_specs,
            out_specs=pl.BlockSpec((1, C, 1), lambda b, h: (b, 0, 0)),
            scratch_shapes=[pltpu.VMEM((1, C, 1), jnp.float32),
                            pltpu.VMEM((1, C, 1), jnp.float32)]),
        compiler_params=pltpu.CompilerParams(
            dimension_semantics=("parallel", "arbitrary"),
            vmem_limit_bytes=vmem_limit),
    )(x_flat, w1t, b1r, w2r, b2r)

    # Pass 2: channel-wise rescale (lane-dense stores in the input dtype).
    out = pl.pallas_call(
        _rescale_kernel,
        out_shape=jax.ShapeDtypeStruct((B, C, hw_pad), x.dtype),
        grid_spec=pltpu.PrefetchScalarGridSpec(
            num_scalar_prefetch=0,
            grid=(B, n_hw),
            in_specs=[pl.BlockSpec((1, C, thw), lambda b, h: (b, 0, h)),
                      pl.BlockSpec((1, C, 1), lambda b, h: (b, 0, 0))],
            out_specs=pl.BlockSpec((1, C, thw), lambda b, h: (b, 0, h))),
        compiler_params=pltpu.CompilerParams(
            dimension_semantics=("parallel", "parallel"),
            vmem_limit_bytes=vmem_limit),
    )(x_flat, scale)

    if hw_pad != HW:
        out = out[:, :, :HW]
    return out.reshape(B, C, H, W)


cca_layer = jax.jit(cca_layer)


# ----------------------------- reference ----------------------------------------

def reference_cca(x, w1, b1, w2, b2):
    """Pure-JAX reference replicating the PyTorch forward."""
    mean = jnp.mean(x, axis=(2, 3), keepdims=True)
    var = jnp.mean((x - mean) ** 2, axis=(2, 3), keepdims=True)
    y = jnp.sqrt(var) + mean                                      # (B, C, 1, 1)
    yv = y[:, :, 0, 0]                                            # (B, C)
    z1 = jnp.maximum(yv @ w1.T + b1, 0.0)
    z2 = jax.nn.sigmoid(z1 @ w2.T + b2)
    return x * z2[:, :, None, None]


if __name__ == "__main__":
    # Shapes consistent with CCALayer(channel=32, reduction=16): Cr = 2.
    B, C, H, W = 2, 32, 16, 16
    reduction = 16
    Cr = C // reduction

    key = jax.random.PRNGKey(0)
    kx, kw1, kb1, kw2, kb2 = jax.random.split(key, 5)

    x = jax.random.normal(kx, (B, C, H, W), dtype=jnp.float32)
    # 1x1 conv weights (Conv2d(C, Cr, 1)) == dense (Cr, C); deterministic init.
    w1 = jax.random.normal(kw1, (Cr, C), dtype=jnp.float32) * 0.1
    b1 = jax.random.normal(kb1, (Cr,), dtype=jnp.float32) * 0.1
    w2 = jax.random.normal(kw2, (C, Cr), dtype=jnp.float32) * 0.1
    b2 = jax.random.normal(kb2, (C,), dtype=jnp.float32) * 0.1

    out = cca_layer(x, w1, b1, w2, b2)
    jax.block_until_ready(out)

    ref = reference_cca(x, w1, b1, w2, b2)
    assert out.shape == (B, C, H, W)
    assert jnp.allclose(out, ref, atol=5e-5, rtol=1e-5), "mismatch vs reference"

    print("KERNEL_OK")
</pallas_src>

<mosaic_0001>
module attributes {stable_mosaic.version = 11 : i64} {
  func.func @kernel(%arg0: i32, %arg1: memref<1x32x256xf32, #tpu.memory_space<vmem>>, %arg2: memref<32x2xf32, #tpu.memory_space<vmem>>, %arg3: memref<1x2xf32, #tpu.memory_space<vmem>>, %arg4: memref<32x2xf32, #tpu.memory_space<vmem>>, %arg5: memref<32x1xf32, #tpu.memory_space<vmem>>, %arg6: memref<1x32x256xf32, #tpu.memory_space<vmem>>) attributes {dimension_semantics = [#tpu.dimension_semantics<parallel>], iteration_bounds = array<i64: 2>, scalar_prefetch = 0 : i64, scratch_operands = 0 : i64, tpu.core_type = #tpu.core_type<tc>, window_params = [{transform_indices = @transform_0, window_bounds = array<i64: 1, 32, 256>}, {pipeline_mode = #tpu.pipeline_mode<synchronous>, transform_indices = @transform_1, window_bounds = array<i64: 32, 2>}, {pipeline_mode = #tpu.pipeline_mode<synchronous>, transform_indices = @transform_2, window_bounds = array<i64: 1, 2>}, {pipeline_mode = #tpu.pipeline_mode<synchronous>, transform_indices = @transform_3, window_bounds = array<i64: 32, 2>}, {pipeline_mode = #tpu.pipeline_mode<synchronous>, transform_indices = @transform_4, window_bounds = array<i64: 32, 1>}, {transform_indices = @transform_5, window_bounds = array<i64: 1, 32, 256>}]} {
    %c0 = arith.constant 0 : index
    %c0_0 = arith.constant 0 : index
    %c0_1 = arith.constant 0 : index
    %0 = vector.load %arg1[%c0, %c0_0, %c0_1] : memref<1x32x256xf32, #tpu.memory_space<vmem>>, vector<1x32x256xf32>
    %cst = arith.constant dense<0.000000e+00> : vector<1x32xf32>
    %1 = vector.multi_reduction <add>, %0, %cst [2] : vector<1x32x256xf32> to vector<1x32xf32>
    %2 = vector.shape_cast %1 : vector<1x32xf32> to vector<1x32x1xf32>
    %cst_2 = arith.constant 3.906250e-03 : f32
    %3 = vector.broadcast %cst_2 : f32 to vector<1x32x1xf32>
    %4 = arith.mulf %2, %3 : vector<1x32x1xf32>
    %5 = vector.broadcast %4 : vector<1x32x1xf32> to vector<1x32x256xf32>
    %6 = arith.subf %0, %5 : vector<1x32x256xf32>
    %7 = arith.mulf %6, %6 : vector<1x32x256xf32>
    %cst_3 = arith.constant dense<0.000000e+00> : vector<1x32xf32>
    %8 = vector.multi_reduction <add>, %7, %cst_3 [2] : vector<1x32x256xf32> to vector<1x32xf32>
    %9 = vector.shape_cast %8 : vector<1x32xf32> to vector<1x32x1xf32>
    %cst_4 = arith.constant 3.906250e-03 : f32
    %10 = vector.broadcast %cst_4 : f32 to vector<1x32x1xf32>
    %11 = arith.mulf %9, %10 : vector<1x32x1xf32>
    %12 = math.sqrt %11 : vector<1x32x1xf32>
    %13 = arith.addf %12, %4 : vector<1x32x1xf32>
    %14 = vector.shape_cast %13 : vector<1x32x1xf32> to vector<32x1xf32>
    %c0_5 = arith.constant 0 : index
    %c0_6 = arith.constant 0 : index
    %15 = vector.load %arg2[%c0_5, %c0_6] : memref<32x2xf32, #tpu.memory_space<vmem>>, vector<32x2xf32>
    %16 = vector.broadcast %14 : vector<32x1xf32> to vector<32x2xf32>
    %17 = arith.mulf %15, %16 : vector<32x2xf32>
    %cst_7 = arith.constant dense<0.000000e+00> : vector<2xf32>
    %18 = vector.multi_reduction <add>, %17, %cst_7 [0] : vector<32x2xf32> to vector<2xf32>
    %19 = vector.shape_cast %18 : vector<2xf32> to vector<1x2xf32>
    %c0_8 = arith.constant 0 : index
    %c0_9 = arith.constant 0 : index
    %20 = vector.load %arg3[%c0_8, %c0_9] : memref<1x2xf32, #tpu.memory_space<vmem>>, vector<1x2xf32>
    %21 = arith.addf %19, %20 : vector<1x2xf32>
    %cst_10 = arith.constant 0.000000e+00 : f32
    %22 = vector.broadcast %cst_10 : f32 to vector<1x2xf32>
    %23 = arith.maximumf %21, %22 : vector<1x2xf32>
    %c0_11 = arith.constant 0 : index
    %c0_12 = arith.constant 0 : index
    %24 = vector.load %arg4[%c0_11, %c0_12] : memref<32x2xf32, #tpu.memory_space<vmem>>, vector<32x2xf32>
    %25 = vector.broadcast %23 : vector<1x2xf32> to vector<32x2xf32>
    %26 = arith.mulf %24, %25 : vector<32x2xf32>
    %cst_13 = arith.constant dense<0.000000e+00> : vector<32xf32>
    %27 = vector.multi_reduction <add>, %26, %cst_13 [1] : vector<32x2xf32> to vector<32xf32>
    %28 = vector.shape_cast %27 : vector<32xf32> to vector<32x1xf32>
    %c0_14 = arith.constant 0 : index
    %c0_15 = arith.constant 0 : index
    %29 = vector.load %arg5[%c0_14, %c0_15] : memref<32x1xf32, #tpu.memory_space<vmem>>, vector<32x1xf32>
    %30 = arith.addf %28, %29 : vector<32x1xf32>
    %31 = arith.negf %30 : vector<32x1xf32>
    %32 = math.exp %31 : vector<32x1xf32>
    %cst_16 = arith.constant 1.000000e+00 : f32
    %33 = vector.broadcast %cst_16 : f32 to vector<32x1xf32>
    %34 = arith.addf %33, %32 : vector<32x1xf32>
    %35 = arith.divf %33, %34 : vector<32x1xf32>
    %36 = vector.shape_cast %35 : vector<32x1xf32> to vector<1x32x1xf32>
    %37 = vector.broadcast %36 : vector<1x32x1xf32> to vector<1x32x256xf32>
    %38 = arith.mulf %0, %37 : vector<1x32x256xf32>
    %c0_17 = arith.constant 0 : index
    %c0_18 = arith.constant 0 : index
    %c0_19 = arith.constant 0 : index
    %39 = vector.load %arg6[%c0_17, %c0_18, %c0_19] : memref<1x32x256xf32, #tpu.memory_space<vmem>>, vector<1x32x256xf32>
    tpu.vector_store %arg6[%c0_17, %c0_18, %c0_19], %38 {strides = array<i32>} : memref<1x32x256xf32, #tpu.memory_space<vmem>>, vector<1x32x256xf32>,
    return
  }
  func.func @transform_0(%arg0: i32) -> (i32, i32, i32) {
    %c0_i32 = arith.constant 0 : i32
    %c0_i32_0 = arith.constant 0 : i32
    %c0_i32_1 = arith.constant 0 : i32
    return %arg0, %c0_i32, %c0_i32_0 : i32, i32, i32
  }
  func.func @transform_1(%arg0: i32) -> (i32, i32) {
    %c0_i32 = arith.constant 0 : i32
    %c0_i32_0 = arith.constant 0 : i32
    %c0_i32_1 = arith.constant 0 : i32
    return %c0_i32, %c0_i32_0 : i32, i32
  }
  func.func @transform_2(%arg0: i32) -> (i32, i32) {
    %c0_i32 = arith.constant 0 : i32
    %c0_i32_0 = arith.constant 0 : i32
    %c0_i32_1 = arith.constant 0 : i32
    return %c0_i32, %c0_i32_0 : i32, i32
  }
  func.func @transform_3(%arg0: i32) -> (i32, i32) {
    %c0_i32 = arith.constant 0 : i32
    %c0_i32_0 = arith.constant 0 : i32
    %c0_i32_1 = arith.constant 0 : i32
    return %c0_i32, %c0_i32_0 : i32, i32
  }
  func.func @transform_4(%arg0: i32) -> (i32, i32) {
    %c0_i32 = arith.constant 0 : i32
    %c0_i32_0 = arith.constant 0 : i32
    %c0_i32_1 = arith.constant 0 : i32
    return %c0_i32, %c0_i32_0 : i32, i32
  }
  func.func @transform_5(%arg0: i32) -> (i32, i32, i32) {
    %c0_i32 = arith.constant 0 : i32
    %c0_i32_0 = arith.constant 0 : i32
    %c0_i32_1 = arith.constant 0 : i32
    return %arg0, %c0_i32, %c0_i32_0 : i32, i32, i32
  }
}

</mosaic_0001>

<llo_original>
// kernel: cca_layer.1
$region0: #{cca_layer.1}
  #allocation0 [shape = 'u32[]', space=smem, size = 0x4, offset = 0x4, fixed_abs, tag = 'smem constant byte address 0x4 - core index']
  #allocation1 [shape = 'u32[144,128]{1,0:T(1,128)}', space=vmem, size = 0x12000, scoped, tag = 'internal scratch']
  %s0 = inlined_call_operand.vmem [shape: f32[2,32,256], index: 0, kind: input, shape index: {}]
  %s1 = inlined_call_operand.vmem [shape: f32[32,2], index: 1, kind: input, shape index: {}]
  %s2 = inlined_call_operand.vmem [shape: f32[1,2], index: 2, kind: input, shape index: {}]
  %s3 = inlined_call_operand.vmem [shape: f32[32,2], index: 3, kind: input, shape index: {}]
  %s4 = inlined_call_operand.vmem [shape: f32[32,1], index: 4, kind: input, shape index: {}]
  %s5 = inlined_call_operand.vmem [shape: f32[2,32,256], index: 5, kind: output, shape index: {}]
  %s6 = sld [smem:[#allocation0]]
  $region53: #{cca_layer.1} parent=0
    _
  %s8 = ssub.s32 1, %s6
  %s9 = scalar_select 0, %s8, %s6
  loop: start=0, step=1, limit=4
  $region2: #{cca_layer.1} parent=0 // loop_pre_header
    _
  $region3: #{cca_layer.1} parent=0 // loop_header
    %s11 = sphi 0, %s15
    %p12 = scmp.ge.s32.totalorder %s11, 4
    %s21 = sphi 0, %s23
    %s24 = sphi 0, %s21
    %s25 = sphi 0, %s24
    %s41 = sphi 0, %s25
    %s45 = sphi 0, %s45
    %s47 = sphi 0, %s45
    %s48 = sphi 0, %s47
    %s62 = sphi 0, %s48
    %s66 = sphi 0, %s66
    %s68 = sphi 0, %s66
    %s69 = sphi 0, %s68
    %s83 = sphi 0, %s69
    %s87 = sphi 0, %s87
    %s89 = sphi 0, %s87
    %s90 = sphi 0, %s89
    %s104 = sphi 0, %s90
    %s108 = sphi 0, %s108
    %s110 = sphi 0, %s108
    %s111 = sphi 0, %s110
    %s125 = sphi 0, %s111
    %s131 = sphi 0, %s133
    %s134 = sphi 0, %s131
    %s135 = sphi 0, %s134
    %s151 = sphi 0, %s135
  $region4: #{cca_layer.1} parent=0 // loop_header_branch
    %14 = sbr.rel (%p12) target = $region8
  $region5: #{cca_layer.1} parent=0 // loop_body
    %s16 = ssub.s32 %s11, 1
    %s17 = ssub.s32 %s11, 2
    %s18 = sadd.s32 %s11, 1
    %s19 = ssub.s32 %s11, %s18
    %p20 = scmp.eq.s32.totalorder %s19, 0
    %s22 = sadd.s32 %s21, 1
    %s23 = scalar_select %p20, %s21, %s22
    %p26 = pneg %p20
    %p27 = scmp.eq.s32.totalorder %s11, 1
    %p28 = por %p26, %p27
    %p29 = scmp.ne.s32.totalorder %s21, %s24
    %p30 = scmp.eq.s32.totalorder %s11, 0
    %p31 = por %p29, %p30
    %p32 = scmp.ne.s32.totalorder %s21, %s24
    %p33 = scmp.eq.s32.totalorder %s16, 1
    %p34 = por %p32, %p33
    %p35 = scmp.ne.s32.totalorder %s24, %s25
    %p36 = scmp.eq.s32.totalorder %s16, 0
    %p37 = por %p35, %p36
    %p38 = scmp.ne.s32.totalorder %s24, %s25
    %p39 = scmp.eq.s32.totalorder %s17, 1
    %p40 = por %p38, %p39
    %p42 = scmp.ne.s32.totalorder %s25, %s41
    %p43 = scmp.eq.s32.totalorder %s17, 0
    %p44 = por %p42, %p43
    %s46 = sadd.s32 %s45, 1
    %p49 = scmp.eq.s32.totalorder %s11, 1
    %p50 = scmp.ne.s32.totalorder %s45, %s47
    %p51 = scmp.eq.s32.totalorder %s11, 0
    %p52 = por %p50, %p51
    %p53 = scmp.ne.s32.totalorder %s45, %s47
    %p54 = scmp.eq.s32.totalorder %s16, 1
    %p55 = por %p53, %p54
    %p56 = scmp.ne.s32.totalorder %s47, %s48
    %p57 = scmp.eq.s32.totalorder %s16, 0
    %p58 = por %p56, %p57
    %p59 = scmp.ne.s32.totalorder %s47, %s48
    %p60 = scmp.eq.s32.totalorder %s17, 1
    %p61 = por %p59, %p60
    %p63 = scmp.ne.s32.totalorder %s48, %s62
    %p64 = scmp.eq.s32.totalorder %s17, 0
    %p65 = por %p63, %p64
    %s67 = sadd.s32 %s66, 1
    %p70 = scmp.eq.s32.totalorder %s11, 1
    %p71 = scmp.ne.s32.totalorder %s66, %s68
    %p72 = scmp.eq.s32.totalorder %s11, 0
    %p73 = por %p71, %p72
    %p74 = scmp.ne.s32.totalorder %s66, %s68
    %p75 = scmp.eq.s32.totalorder %s16, 1
    %p76 = por %p74, %p75
    %p77 = scmp.ne.s32.totalorder %s68, %s69
    %p78 = scmp.eq.s32.totalorder %s16, 0
    %p79 = por %p77, %p78
    %p80 = scmp.ne.s32.totalorder %s68, %s69
    %p81 = scmp.eq.s32.totalorder %s17, 1
    %p82 = por %p80, %p81
    %p84 = scmp.ne.s32.totalorder %s69, %s83
    %p85 = scmp.eq.s32.totalorder %s17, 0
    %p86 = por %p84, %p85
    %s88 = sadd.s32 %s87, 1
    %p91 = scmp.eq.s32.totalorder %s11, 1
    %p92 = scmp.ne.s32.totalorder %s87, %s89
    %p93 = scmp.eq.s32.totalorder %s11, 0
    %p94 = por %p92, %p93
    %p95 = scmp.ne.s32.totalorder %s87, %s89
    %p96 = scmp.eq.s32.totalorder %s16, 1
    %p97 = por %p95, %p96
    %p98 = scmp.ne.s32.totalorder %s89, %s90
    %p99 = scmp.eq.s32.totalorder %s16, 0
    %p100 = por %p98, %p99
    %p101 = scmp.ne.s32.totalorder %s89, %s90
    %p102 = scmp.eq.s32.totalorder %s17, 1
    %p103 = por %p101, %p102
    %p105 = scmp.ne.s32.totalorder %s90, %s104
    %p106 = scmp.eq.s32.totalorder %s17, 0
    %p107 = por %p105, %p106
    %s109 = sadd.s32 %s108, 1
    %p112 = scmp.eq.s32.totalorder %s11, 1
    %p113 = scmp.ne.s32.totalorder %s108, %s110
    %p114 = scmp.eq.s32.totalorder %s11, 0
    %p115 = por %p113, %p114
    %p116 = scmp.ne.s32.totalorder %s108, %s110
    %p117 = scmp.eq.s32.totalorder %s16, 1
    %p118 = por %p116, %p117
    %p119 = scmp.ne.s32.totalorder %s110, %s111
    %p120 = scmp.eq.s32.totalorder %s16, 0
    %p121 = por %p119, %p120
    %p122 = scmp.ne.s32.totalorder %s110, %s111
    %p123 = scmp.eq.s32.totalorder %s17, 1
    %p124 = por %p122, %p123
    %p126 = scmp.ne.s32.totalorder %s111, %s125
    %p127 = scmp.eq.s32.totalorder %s17, 0
    %p128 = por %p126, %p127
    %s129 = ssub.s32 %s11, %s18
    %p130 = scmp.eq.s32.totalorder %s129, 0
    %s132 = sadd.s32 %s131, 1
    %s133 = scalar_select %p130, %s131, %s132
    %p136 = pneg %p130
    %p137 = scmp.eq.s32.totalorder %s11, 1
    %p138 = por %p136, %p137
    %p139 = scmp.ne.s32.totalorder %s131, %s134
    %p140 = scmp.eq.s32.totalorder %s11, 0
    %p141 = por %p139, %p140
    %p142 = scmp.ne.s32.totalorder %s131, %s134
    %p143 = scmp.eq.s32.totalorder %s16, 1
    %p144 = por %p142, %p143
    %p145 = scmp.ne.s32.totalorder %s134, %s135
    %p146 = scmp.eq.s32.totalorder %s16, 0
    %p147 = por %p145, %p146
    %p148 = scmp.ne.s32.totalorder %s134, %s135
    %p149 = scmp.eq.s32.totalorder %s17, 1
    %p150 = por %p148, %p149
    %p152 = scmp.ne.s32.totalorder %s135, %s151
    %p153 = scmp.eq.s32.totalorder %s17, 0
    %p154 = por %p152, %p153
    %p155 = scmp.le.s32.totalorder 1, %s11
    %p156 = scmp.lt.s32.totalorder %s11, 3
    %p157 = pnand %p155, %p156
    %p158 = pneg %p157
    // Predicated region
    $region9: #{cca_layer.1} parent=5 // pred_check
      _
    $region10: #{cca_layer.1} parent=5 // pred_check_branch
      %160 = sbr.rel (%p157) target = $region12
    $region11: #{cca_layer.1} parent=5 // pred_region
      %s161 = ssub.s32 %s11, 1
      // Predicated region
      $region13: #{cca_layer.1} parent=11 // pred_check
        %p162 = pneg %p58
      $region14: #{cca_layer.1} parent=11 // pred_check_branch
        %164 = sbr.rel (%p162) target = $region16
      $region15: #{cca_layer.1} parent=11 // pred_region
        _
      $region16: #{cca_layer.1} parent=11 // pred_fallthru
        _
      // Predicated region
      $region17: #{cca_layer.1} parent=11 // pred_check
        %p165 = pneg %p79
      $region18: #{cca_layer.1} parent=11 // pred_check_branch
        %167 = sbr.rel (%p165) target = $region20
      $region19: #{cca_layer.1} parent=11 // pred_region
        _
      $region20: #{cca_layer.1} parent=11 // pred_fallthru
        _
      // Predicated region
      $region21: #{cca_layer.1} parent=11 // pred_check
        %p168 = pneg %p100
      $region22: #{cca_layer.1} parent=11 // pred_check_branch
        %170 = sbr.rel (%p168) target = $region24
      $region23: #{cca_layer.1} parent=11 // pred_region
        _
      $region24: #{cca_layer.1} parent=11 // pred_fallthru
        _
      // Predicated region
      $region25: #{cca_layer.1} parent=11 // pred_check
        %p171 = pneg %p121
      $region26: #{cca_layer.1} parent=11 // pred_check_branch
        %173 = sbr.rel (%p171) target = $region28
      $region27: #{cca_layer.1} parent=11 // pred_region
        _
      $region28: #{cca_layer.1} parent=11 // pred_fallthru
        _
    $region12: #{cca_layer.1} parent=5 // pred_fallthru
      _
    %p174 = scmp.lt.s32.totalorder %s11, 2
    // Predicated region
    $region29: #{cca_layer.1} parent=5 // pred_check
      %p175 = pneg %p174
    $region30: #{cca_layer.1} parent=5 // pred_check_branch
      %177 = sbr.rel (%p175) target = $region32
    $region31: #{cca_layer.1} parent=5 // pred_region
      // Predicated region
      $region33: #{cca_layer.1} parent=31 // pred_check
        %p178 = pneg %p31
      $region34: #{cca_layer.1} parent=31 // pred_check_branch
        %180 = sbr.rel (%p178) target = $region36
      $region35: #{cca_layer.1} parent=31 // pred_region
        %p181 = scmp.lt.s32.totalorder %s11, 1
        %s182 = scalar_select %p181, %s11, 1
        %s183 = smul.addr %s182, 8
        %s184 = smul.addr %s183, 8
        %s185 = scalar_lea.vmem %s0, %s184
      $region36: #{cca_layer.1} parent=31 // pred_fallthru
        _
    $region32: #{cca_layer.1} parent=5 // pred_fallthru
      _
    %p186 = scmp.le.s32.totalorder 1, %s11
    %p187 = scmp.lt.s32.totalorder %s11, 3
    %p188 = pnand %p186, %p187
    %p189 = pneg %p188
    // Predicated region
    $region37: #{cca_layer.1} parent=5 // pred_check
      _
    $region38: #{cca_layer.1} parent=5 // pred_check_branch
      %191 = sbr.rel (%p188) target = $region40
    $region39: #{cca_layer.1} parent=5 // pred_region
      %s192 = ssub.s32 %s11, 1
      %p193 = scmp.lt.s32.totalorder %s16, 1
      %s194 = scalar_select %p193, %s16, 1
      %s195 = smul.addr %s194, 8
      %s196 = smul.addr %s195, 8
      %s197 = scalar_lea.vmem %s0, %s196
      %p198 = pneg %p37
      %p199 = pneg %p34
      %p200 = pneg %p58
      %p201 = pneg %p55
      %p202 = pneg %p79
      %p203 = pneg %p76
      %p204 = pneg %p100
      %p205 = pneg %p97
      %p206 = pneg %p121
      %p207 = pneg %p118
      %p208 = pneg %p147
      %p209 = pneg %p144
      %p210 = scmp.lt.s32.totalorder %s16, 1
      %s211 = scalar_select %p210, %s16, 1
      %s212 = smul.addr %s211, 8
      %s213 = smul.addr %s212, 8
      %s214 = scalar_lea.vmem %s5, %s213
      %p215 = scmp.lt.s32.totalorder %s16, 1
      %s216 = scalar_select %p215, %s16, 1
      %s217 = smul.addr %s216, 8
      %s218 = smul.addr %s217, 8
      %s219 = scalar_lea.vmem %s0, %s218
      %p220 = scmp.lt.s32.totalorder %s16, 1
      %s221 = scalar_select %p220, %s16, 1
      %s222 = smul.addr %s221, 8
      %s223 = smul.addr %s222, 8
      %s224 = scalar_lea.vmem %s5, %s223
      %v225 = vld [vmem:[%s219] sm:$0xff]
      %v226 = vld [vmem:[%s219 + $0x8] sm:$0xff]
      %v227 = vld [vmem:[%s219 + $0x10] sm:$0xff]
      %v228 = vld [vmem:[%s219 + $0x18] sm:$0xff]
      %v229 = vld [vmem:[%s219 + $0x20] sm:$0xff]
      %v230 = vld [vmem:[%s219 + $0x28] sm:$0xff]
      %v231 = vld [vmem:[%s219 + $0x30] sm:$0xff]
      %v232 = vld [vmem:[%s219 + $0x38] sm:$0xff]
      %v233 = vadd.f32 %v225, %v226
      %234 = vadd.xlane.f32.xlu0 %v233
      %v235 = vpop.xlane.xlu0 %234
      %v236 = vadd.f32 %v227, %v228
      %237 = vadd.xlane.f32.xlu0 %v236
      %v238 = vpop.xlane.xlu0 %237
      %v239 = vadd.f32 %v229, %v230
      %240 = vadd.xlane.f32.xlu0 %v239
      %v241 = vpop.xlane.xlu0 %240
      %v242 = vadd.f32 %v231, %v232
      %243 = vadd.xlane.f32.xlu0 %v242
      %v244 = vpop.xlane.xlu0 %243
      %v245 = vmul.f32 %v235, 0.00390625
      %v246 = vmul.f32 %v238, 0.00390625
      %v247 = vmul.f32 %v241, 0.00390625
      %v248 = vmul.f32 %v244, 0.00390625
      %v249 = vsub.f32 %v225, %v245
      %v250 = vsub.f32 %v226, %v245
      %v251 = vsub.f32 %v227, %v246
      %v252 = vsub.f32 %v228, %v246
      %v253 = vsub.f32 %v229, %v247
      %v254 = vsub.f32 %v230, %v247
      %v255 = vsub.f32 %v231, %v248
      %v256 = vsub.f32 %v232, %v248
      %v257 = vmul.f32 %v249, %v249
      %v258 = vmul.f32 %v250, %v250
      %v259 = vmul.f32 %v251, %v251
      %v260 = vmul.f32 %v252, %v252
      %v261 = vmul.f32 %v253, %v253
      %v262 = vmul.f32 %v254, %v254
      %v263 = vmul.f32 %v255, %v255
      %v264 = vmul.f32 %v256, %v256
      %v265 = vadd.f32 %v257, %v258
      %266 = vadd.xlane.f32.xlu0 %v265
      %v267 = vpop.xlane.xlu0 %266
      %v268 = vadd.f32 %v259, %v260
      %269 = vadd.xlane.f32.xlu0 %v268
      %v270 = vpop.xlane.xlu0 %269
      %v271 = vadd.f32 %v261, %v262
      %272 = vadd.xlane.f32.xlu0 %v271
      %v273 = vpop.xlane.xlu0 %272
      %v274 = vadd.f32 %v263, %v264
      %275 = vadd.xlane.f32.xlu0 %v274
      %v276 = vpop.xlane.xlu0 %275
      %v277 = vmul.f32 %v267, 0.00390625
      %v278 = vmul.f32 %v270, 0.00390625
      %v279 = vmul.f32 %v273, 0.00390625
      %v280 = vmul.f32 %v276, 0.00390625
      %v281 = vrsqrt.pop %v277
      %v282 = vmul.f32 %v277, %v281
      %vm283 = vcmp.eq.f32.partialorder %v277, inf
      %v284 = vsel %vm283, %v277, %v282
      %vm285 = vcmp.eq.f32.partialorder %v277, 0.0
      %v286 = vand.u32 %v277, 2147483648
      %v287 = vsel %vm285, %v286, %v284
      %v288 = vrsqrt.pop %v278
      %v289 = vmul.f32 %v278, %v288
      %vm290 = vcmp.eq.f32.partialorder %v278, inf
      %v291 = vsel %vm290, %v278, %v289
      %vm292 = vcmp.eq.f32.partialorder %v278, 0.0
      %v293 = vand.u32 %v278, 2147483648
      %v294 = vsel %vm292, %v293, %v291
      %v295 = vrsqrt.pop %v279
      %v296 = vmul.f32 %v279, %v295
      %vm297 = vcmp.eq.f32.partialorder %v279, inf
      %v298 = vsel %vm297, %v279, %v296
      %vm299 = vcmp.eq.f32.partialorder %v279, 0.0
      %v300 = vand.u32 %v279, 2147483648
      %v301 = vsel %vm299, %v300, %v298
      %v302 = vrsqrt.pop %v280
      %v303 = vmul.f32 %v280, %v302
      %vm304 = vcmp.eq.f32.partialorder %v280, inf
      %v305 = vsel %vm304, %v280, %v303
      %vm306 = vcmp.eq.f32.partialorder %v280, 0.0
      %v307 = vand.u32 %v280, 2147483648
      %v308 = vsel %vm306, %v307, %v305
      %v309 = vadd.f32 %v287, %v245
      %v310 = vadd.f32 %v294, %v246
      %v311 = vadd.f32 %v301, %v247
      %v312 = vadd.f32 %v308, %v248
      %v313 = vld [vmem:[%s1] sm:$0xff]
      %v314 = vld [vmem:[%s1 + $0x8] sm:$0xff]
      %v315 = vld [vmem:[%s1 + $0x10] sm:$0xff]
      %v316 = vld [vmem:[%s1 + $0x18] sm:$0xff]
      %v317 = vmul.f32 %v313, %v309
      %v318 = vmul.f32 %v314, %v310
      %v319 = vmul.f32 %v315, %v311
      %v320 = vmul.f32 %v316, %v312
      %vm321 = vcmask 15360
      %v322 = vsel %vm321, %v317, 0.0
      %v323 = vsel %vm321, %v318, 0.0
      %v324 = vadd.f32 %v322, %v323
      %v325 = vsel %vm321, %v319, 0.0
      %v326 = vadd.f32 %v324, %v325
      %v327 = vsel %vm321, %v320, 0.0
      %v328 = vadd.f32 %v326, %v327
      %v329 = vrot.slane %v328, 4
      %v330 = vadd.f32 %v328, %v329
      %v331 = vrot.slane %v330, 2
      %v332 = vadd.f32 %v330, %v331
      %v333 = vrot.slane %v332, 1
      %v334 = vadd.f32 %v332, %v333
      %v335 = vld [vmem:[%s2] sm:$0x1]
      %v336 = vadd.f32 %v334, %v335
      %v337 = vmax.f32 %v336, 0.0
      %v338 = vld [vmem:[%s3] sm:$0xff]
      %v339 = vld [vmem:[%s3 + $0x8] sm:$0xff]
      %v340 = vld [vmem:[%s3 + $0x10] sm:$0xff]
      %v341 = vld [vmem:[%s3 + $0x18] sm:$0xff]
      %v342 = vlaneseq
      %v343 = vshrl.u32 %v342, 7
      %v344 = vsub.s32 0, %v343
      %v345 = vrot.slane %v337, %v344
      %v346 = vmul.f32 %v338, %v345
      %v347 = vmul.f32 %v339, %v345
      %v348 = vmul.f32 %v340, %v345
      %v349 = vmul.f32 %v341, %v345
      %v350 = vsel %vm321, %v346, 0.0
      %351 = vadd.xlane.f32.xlu0 %v350
      %v352 = vpop.xlane.xlu0 %351
      %v353 = vsel %vm321, %v347, 0.0
      %354 = vadd.xlane.f32.xlu0 %v353
      %v355 = vpop.xlane.xlu0 %354
      %v356 = vsel %vm321, %v348, 0.0
      %357 = vadd.xlane.f32.xlu0 %v356
      %v358 = vpop.xlane.xlu0 %357
      %v359 = vsel %vm321, %v349, 0.0
      %360 = vadd.xlane.f32.xlu0 %v359
      %v361 = vpop.xlane.xlu0 %360
      %v362 = vld [vmem:[%s4] sm:$0xff]
      %v363 = vld [vmem:[%s4 + $0x8] sm:$0xff]
      %v364 = vld [vmem:[%s4 + $0x10] sm:$0xff]
      %v365 = vld [vmem:[%s4 + $0x18] sm:$0xff]
      %v366 = vadd.f32 %v352, %v362
      %v367 = vadd.f32 %v355, %v363
      %v368 = vadd.f32 %v358, %v364
      %v369 = vadd.f32 %v361, %v365
      %v370 = vxor.u32 %v366, 2147483648
      %v371 = vxor.u32 %v367, 2147483648
      %v372 = vxor.u32 %v368, 2147483648
      %v373 = vxor.u32 %v369, 2147483648
      %v374 = vmul.f32 %v370, 1.442695
      %v375 = vpow.pop %v374
      %v376 = vmul.f32 %v371, 1.442695
      %v377 = vpow.pop %v376
      %v378 = vmul.f32 %v372, 1.442695
      %v379 = vpow.pop %v378
      %v380 = vmul.f32 %v373, 1.442695
      %v381 = vpow.pop %v380
      %v382 = vadd.f32 %v375, 1.0
      %v383 = vadd.f32 %v377, 1.0
      %v384 = vadd.f32 %v379, 1.0
      %v385 = vadd.f32 %v381, 1.0
      %v386 = vrcp.pop %v382
      %v387 = vmul.f32 1.0, %v386
      %v388 = vrcp.pop %v383
      %v389 = vmul.f32 1.0, %v388
      %v390 = vrcp.pop %v384
      %v391 = vmul.f32 1.0, %v390
      %v392 = vrcp.pop %v385
      %v393 = vmul.f32 1.0, %v392
      %395 = vset.pattern.permute.xlu0 0
      %396 = vperm.xlu0 %395, %v387
      %v397 = vpop.permute.xlu0 %396
      %400 = vset.pattern.permute.xlu0 0
      %401 = vperm.xlu0 %400, %v389
      %v402 = vpop.permute.xlu0 %401
      %405 = vset.pattern.permute.xlu0 0
      %406 = vperm.xlu0 %405, %v391
      %v407 = vpop.permute.xlu0 %406
      %410 = vset.pattern.permute.xlu0 0
      %411 = vperm.xlu0 %410, %v393
      %v412 = vpop.permute.xlu0 %411
      %v414 = vmul.f32 %v225, %v397
      %v415 = vmul.f32 %v226, %v397
      %v416 = vmul.f32 %v227, %v402
      %v417 = vmul.f32 %v228, %v402
      %v418 = vmul.f32 %v229, %v407
      %v419 = vmul.f32 %v230, %v407
      %v420 = vmul.f32 %v231, %v412
      %v421 = vmul.f32 %v232, %v412
      %422 = vst [vmem:[%s224] sm:$0xff] %v414
      %423 = vst [vmem:[%s224 + $0x8] sm:$0xff] %v415
      %424 = vst [vmem:[%s224 + $0x10] sm:$0xff] %v416
      %425 = vst [vmem:[%s224 + $0x18] sm:$0xff] %v417
      %426 = vst [vmem:[%s224 + $0x20] sm:$0xff] %v418
      %427 = vst [vmem:[%s224 + $0x28] sm:$0xff] %v419
      %428 = vst [vmem:[%s224 + $0x30] sm:$0xff] %v420
      %429 = vst [vmem:[%s224 + $0x38] sm:$0xff] %v421
      %p430 = scmp.lt.s32.totalorder %s16, 1
      %s431 = scalar_select %p430, %s16, 1
      %s432 = smul.addr %s431, 8
      %s433 = smul.addr %s432, 8
      %s434 = scalar_lea.vmem %s5, %s433
      // Predicated region
      $region41: #{cca_layer.1} parent=39 // pred_check
        %p435 = pneg %p144
      $region42: #{cca_layer.1} parent=39 // pred_check_branch
        %437 = sbr.rel (%p435) target = $region44
      $region43: #{cca_layer.1} parent=39 // pred_region
        _
      $region44: #{cca_layer.1} parent=39 // pred_fallthru
        _
    $region40: #{cca_layer.1} parent=5 // pred_fallthru
      _
    %p438 = scmp.le.s32.totalorder 2, %s11
    // Predicated region
    $region45: #{cca_layer.1} parent=5 // pred_check
      %p439 = pneg %p438
    $region46: #{cca_layer.1} parent=5 // pred_check_branch
      %441 = sbr.rel (%p439) target = $region48
    $region47: #{cca_layer.1} parent=5 // pred_region
      %s442 = ssub.s32 %s11, 2
      // Predicated region
      $region49: #{cca_layer.1} parent=47 // pred_check
        %p443 = pneg %p150
      $region50: #{cca_layer.1} parent=47 // pred_check_branch
        %445 = sbr.rel (%p443) target = $region52
      $region51: #{cca_layer.1} parent=47 // pred_region
        %p446 = scmp.lt.s32.totalorder %s17, 1
        %s447 = scalar_select %p446, %s17, 1
        %s448 = smul.addr %s447, 8
        %s449 = smul.addr %s448, 8
        %s450 = scalar_lea.vmem %s5, %s449
      $region52: #{cca_layer.1} parent=47 // pred_fallthru
        _
    $region48: #{cca_layer.1} parent=5 // pred_fallthru
      _
  $region6: #{cca_layer.1} parent=0 // loop_footer
    %s15 = sadd.s32 1, %s11
  $region7: #{cca_layer.1} parent=0 // loop_footer_branch
    %10 = sbr.rel target = $region3
  $region8: #{cca_layer.1} parent=0 // loop_exit
    _

</llo_original>
